<compile_context>
chip_gen: v6e
topology: v6e:2x2x1
jax: 0.10.0
libtpu: 0.0.40
codegen_flags: <defaults>
</compile_context>

<pallas_src>
import functools

import jax
import jax.numpy as jnp
from jax.experimental import pallas as pl
from jax.experimental.pallas import tpu as pltpu

EPS = 1e-05


# ----------------------------------------------------------------------------
# Fused Pallas kernel
# ----------------------------------------------------------------------------
def _fused_entity_dense_kernel(*refs, nv, ne, l_ent, tb):
    """Fused EntityDenseLayer.forward for one batch tile.

    Ref layout (groups present only if non-empty):
      if nv > 0:  xv (TB, Nv) f32, cents (Nv, D) f32, wvt (Nv, D, D) f32 (pre-transposed)
      if ne > 0:  idx (TB, Ne) i32, went (Ne, Lmax, D) f32
      out: (TB, (Nv + Ne) * D) f32   -- lane-dense single store
    """
    o_ref = refs[-1]
    pos = 0
    parts = []

    if nv > 0:
        xv_ref, cent_ref, wvt_ref = refs[0], refs[1], refs[2]
        pos = 3
        xv = xv_ref[...]                      # (TB, Nv)
        cents = cent_ref[...]                 # (Nv, D)
        for j in range(nv):                   # static, unrolled
            x = xv[:, j:j + 1]                # (TB, 1)
            c = cents[j:j + 1, :]             # (1, D)
            dist = 1.0 / (jnp.abs(x - c) + EPS)                    # (TB, D)
            m = jnp.max(dist, axis=-1, keepdims=True)
            e = jnp.exp(dist - m)
            denom = jnp.sum(e, axis=-1, keepdims=True)
            p = e * pl.reciprocal(denom, approx=True)              # softmax rows
            # weight already transposed in the wrapper -> no in-kernel .T
            parts.append(jnp.dot(p, wvt_ref[j],
                                 preferred_element_type=jnp.float32))

    if ne > 0:
        idx_ref, went_ref = refs[pos], refs[pos + 1]
        ids = idx_ref[...]                    # (TB, Ne) int32
        iota = jax.lax.broadcasted_iota(jnp.int32, (tb, l_ent), 1)
        for j in range(ne):                   # static, unrolled
            onehot = (iota == ids[:, j:j + 1]).astype(jnp.float32)  # (TB, Lmax)
            parts.append(jnp.dot(onehot, went_ref[j],
                                 preferred_element_type=jnp.float32))

    # Single lane-dense store of the whole (TB, num_vars*D) tile.
    o_ref[...] = jnp.concatenate(parts, axis=-1).astype(o_ref.dtype)


# ----------------------------------------------------------------------------
# Wrapper
# ----------------------------------------------------------------------------
def entity_dense_layer_forward(x, params, dis_vars_vic, dis_vars_entity):
    """EntityDenseLayer.forward.

    x: dict name -> (B,) array (float for vicinity vars, int for entity vars)
    returns (B, num_vars, D), same ordering as the torch.cat in the reference.
    """
    dis_vars_vic = list(dis_vars_vic or [])
    dis_vars_entity = list(dis_vars_entity or [])
    nv, ne = len(dis_vars_vic), len(dis_vars_entity)
    num_vars = nv + ne
    assert num_vars > 0, "need at least one discrete variable"

    first = (dis_vars_vic + dis_vars_entity)[0]
    B = x[first].shape[0]
    if nv > 0:
        D = params["vic_weights"][dis_vars_vic[0]].shape[1]
    else:
        D = params["ent_weights"][dis_vars_entity[0]].shape[1]

    # Batch tile: <=128 rows (MXU-friendly on all generations); grid over tiles.
    TB = B if B <= 128 else 128
    assert B % TB == 0, "batch must be a multiple of the batch tile"
    grid = (B // TB,)

    inputs = []
    in_specs = []

    if nv > 0:
        for n in dis_vars_vic:
            L, Dw = params["vic_weights"][n].shape
            assert L == Dw == D, (
                "EntityEmbeddingVLayer (mm(w, W.T)) requires num_level == embedding_dim")
            assert params["centroids"][n].shape[0] == D
        xv = jnp.stack([x[n].astype(jnp.float32) for n in dis_vars_vic], axis=1)       # (B, Nv)
        cents = jnp.stack([params["centroids"][n].astype(jnp.float32)
                           for n in dis_vars_vic], axis=0)                             # (Nv, D)
        # Hoisted transpose: store W.T so the kernel computes p @ W.T directly.
        wvt = jnp.stack([params["vic_weights"][n].astype(jnp.float32).T
                         for n in dis_vars_vic], axis=0)                               # (Nv, D, D)
        inputs += [xv, cents, wvt]
        in_specs += [
            pl.BlockSpec((TB, nv), lambda i: (i, 0)),
            pl.BlockSpec((nv, D), lambda i: (0, 0)),
            pl.BlockSpec((nv, D, D), lambda i: (0, 0, 0)),
        ]

    l_max = 0
    if ne > 0:
        l_max = max(params["ent_weights"][n].shape[0] for n in dis_vars_entity)
        idx = jnp.stack([x[n].astype(jnp.int32) for n in dis_vars_entity], axis=1)     # (B, Ne)
        # Zero-pad each table to a common Lmax; padded rows are never selected.
        went = jnp.stack(
            [jnp.pad(params["ent_weights"][n].astype(jnp.float32),
                     ((0, l_max - params["ent_weights"][n].shape[0]), (0, 0)))
             for n in dis_vars_entity],
            axis=0,
        )                                                                              # (Ne, Lmax, D)
        inputs += [idx, went]
        in_specs += [
            pl.BlockSpec((TB, ne), lambda i: (i, 0)),
            pl.BlockSpec((ne, l_max, D), lambda i: (0, 0, 0)),
        ]

    kernel = functools.partial(_fused_entity_dense_kernel,
                               nv=nv, ne=ne, l_ent=l_max, tb=TB)

    out2d = pl.pallas_call(
        kernel,
        out_shape=jax.ShapeDtypeStruct((B, num_vars * D), jnp.float32),
        grid=grid,
        in_specs=in_specs,
        out_specs=pl.BlockSpec((TB, num_vars * D), lambda i: (i, 0)),
        compiler_params=pltpu.CompilerParams(
            dimension_semantics=("parallel",)),   # batch tiles shard across TCs (v7x)
    )(*inputs)

    # conti_vars branch in the reference forward is a no-op (`pass`).
    return out2d.reshape(B, num_vars, D)


# ----------------------------------------------------------------------------
# Pure-JAX reference (correctness check)
# ----------------------------------------------------------------------------
def _reference(x, params, dis_vars_vic, dis_vars_entity):
    outs = []
    for name in dis_vars_vic:
        xv = x[name].astype(jnp.float32)[:, None]                      # (B, 1)
        c = params["centroids"][name].astype(jnp.float32)[None, :]     # (1, L)
        d = 1.0 / (jnp.abs(xv - c) + EPS)
        w = jax.nn.softmax(d, axis=1)
        v = w @ params["vic_weights"][name].T
        outs.append(v[:, None, :])
    for name in dis_vars_entity:
        v = params["ent_weights"][name][x[name]]
        outs.append(v[:, None, :])
    return jnp.concatenate(outs, axis=1)


# ----------------------------------------------------------------------------
# Main
# ----------------------------------------------------------------------------
if __name__ == "__main__":
    B = 8          # batch size
    D = 32         # opt.num_dim (embedding dim)
    dis_vars_vic = ["vic_a", "vic_b"]
    dis_vars_entity = ["ent_a", "ent_b"]
    ent_levels = {"ent_a": 16, "ent_b": 12}   # different num_level per entity var

    key = jax.random.PRNGKey(0)
    keys = jax.random.split(key, 16)
    ki = iter(range(16))

    params = {"centroids": {}, "vic_weights": {}, "ent_weights": {}}
    # Vicinity vars: num_level == D (required by the original mm(w, W.T)).
    for name in dis_vars_vic:
        params["centroids"][name] = jnp.linspace(-1.0, 1.0, D, dtype=jnp.float32)
        params["vic_weights"][name] = jax.random.normal(
            keys[next(ki)], (D, D), dtype=jnp.float32)   # nn.Embedding init ~ N(0, 1)
    for name in dis_vars_entity:
        params["ent_weights"][name] = jax.random.normal(
            keys[next(ki)], (ent_levels[name], D), dtype=jnp.float32)

    x = {}
    for name in dis_vars_vic:
        x[name] = jax.random.uniform(
            keys[next(ki)], (B,), dtype=jnp.float32, minval=-1.0, maxval=1.0)
    for name in dis_vars_entity:
        x[name] = jax.random.randint(
            keys[next(ki)], (B,), 0, ent_levels[name], dtype=jnp.int32)

    out = entity_dense_layer_forward(x, params, dis_vars_vic, dis_vars_entity)
    out = jax.block_until_ready(out)

    ref = _reference(x, params, dis_vars_vic, dis_vars_entity)
    assert out.shape == (B, len(dis_vars_vic) + len(dis_vars_entity), D), out.shape
    # Tolerance relaxed vs. exact match because of pl.reciprocal(approx=True).
    assert jnp.allclose(out, ref, atol=1e-2, rtol=1e-2), "mismatch vs reference"

    print("KERNEL_OK")
</pallas_src>

<mosaic_0001>
module attributes {stable_mosaic.version = 11 : i64} {
  func.func @_fused_entity_dense_kernel(%arg0: i32, %arg1: memref<8x2xf32, #tpu.memory_space<vmem>>, %arg2: memref<2x32xf32, #tpu.memory_space<vmem>>, %arg3: memref<2x32x32xf32, #tpu.memory_space<vmem>>, %arg4: memref<8x2xi32, #tpu.memory_space<vmem>>, %arg5: memref<2x16x32xf32, #tpu.memory_space<vmem>>, %arg6: memref<8x128xf32, #tpu.memory_space<vmem>>) attributes {dimension_semantics = [#tpu.dimension_semantics<parallel>], iteration_bounds = array<i64: 1>, scalar_prefetch = 0 : i64, scratch_operands = 0 : i64, tpu.core_type = #tpu.core_type<tc>, window_params = [{transform_indices = @transform_0, window_bounds = array<i64: 8, 2>}, {pipeline_mode = #tpu.pipeline_mode<synchronous>, transform_indices = @transform_1, window_bounds = array<i64: 2, 32>}, {pipeline_mode = #tpu.pipeline_mode<synchronous>, transform_indices = @transform_2, window_bounds = array<i64: 2, 32, 32>}, {transform_indices = @transform_3, window_bounds = array<i64: 8, 2>}, {pipeline_mode = #tpu.pipeline_mode<synchronous>, transform_indices = @transform_4, window_bounds = array<i64: 2, 16, 32>}, {transform_indices = @transform_5, window_bounds = array<i64: 8, 128>}]} {
    %c0 = arith.constant 0 : index
    %c0_0 = arith.constant 0 : index
    %0 = vector.load %arg1[%c0, %c0_0] : memref<8x2xf32, #tpu.memory_space<vmem>>, vector<8x2xf32>
    %c0_1 = arith.constant 0 : index
    %c0_2 = arith.constant 0 : index
    %1 = vector.load %arg2[%c0_1, %c0_2] : memref<2x32xf32, #tpu.memory_space<vmem>>, vector<2x32xf32>
    %2 = vector.extract_strided_slice %0 {offsets = [0, 0], sizes = [8, 1], strides = [1, 1]} : vector<8x2xf32> to vector<8x1xf32>
    %3 = vector.extract_strided_slice %1 {offsets = [0, 0], sizes = [1, 32], strides = [1, 1]} : vector<2x32xf32> to vector<1x32xf32>
    %4 = vector.broadcast %2 : vector<8x1xf32> to vector<8x32xf32>
    %5 = vector.broadcast %3 : vector<1x32xf32> to vector<8x32xf32>
    %6 = arith.subf %4, %5 : vector<8x32xf32>
    %7 = math.absf %6 : vector<8x32xf32>
    %cst = arith.constant 9.99999974E-6 : f32
    %8 = vector.broadcast %cst : f32 to vector<8x32xf32>
    %9 = arith.addf %7, %8 : vector<8x32xf32>
    %cst_3 = arith.constant 1.000000e+00 : f32
    %10 = vector.broadcast %cst_3 : f32 to vector<8x32xf32>
    %11 = arith.divf %10, %9 : vector<8x32xf32>
    %cst_4 = arith.constant dense<0xFF800000> : vector<8xf32>
    %12 = vector.multi_reduction <maximumf>, %11, %cst_4 [1] : vector<8x32xf32> to vector<8xf32>
    %13 = vector.shape_cast %12 : vector<8xf32> to vector<8x1xf32>
    %14 = vector.broadcast %13 : vector<8x1xf32> to vector<8x32xf32>
    %15 = arith.subf %11, %14 : vector<8x32xf32>
    %16 = math.exp %15 : vector<8x32xf32>
    %cst_5 = arith.constant dense<0.000000e+00> : vector<8xf32>
    %17 = vector.multi_reduction <add>, %16, %cst_5 [1] : vector<8x32xf32> to vector<8xf32>
    %18 = vector.shape_cast %17 : vector<8xf32> to vector<8x1xf32>
    %19 = tpu.reciprocal %18 {approx = true} : vector<8x1xf32> -> vector<8x1xf32>
    %20 = vector.broadcast %19 : vector<8x1xf32> to vector<8x32xf32>
    %21 = arith.mulf %16, %20 : vector<8x32xf32>
    %c0_6 = arith.constant 0 : index
    %c0_7 = arith.constant 0 : index
    %c0_8 = arith.constant 0 : index
    %22 = vector.load %arg3[%c0_6, %c0_7, %c0_8] : memref<2x32x32xf32, #tpu.memory_space<vmem>>, vector<1x32x32xf32>
    %23 = vector.shape_cast %22 : vector<1x32x32xf32> to vector<32x32xf32>
    %cst_9 = arith.constant dense<0.000000e+00> : vector<8x32xf32>
    %24 = tpu.matmul %21, %23, %cst_9 {dimension_numbers = #tpu.dot_dimension_numbers<[1], [0], [0], [1], [0, 0, 1, 1], [], []>} : vector<8x32xf32>, vector<32x32xf32>, vector<8x32xf32> -> vector<8x32xf32>
    %25 = vector.extract_strided_slice %0 {offsets = [0, 1], sizes = [8, 1], strides = [1, 1]} : vector<8x2xf32> to vector<8x1xf32>
    %26 = vector.extract_strided_slice %1 {offsets = [1, 0], sizes = [1, 32], strides = [1, 1]} : vector<2x32xf32> to vector<1x32xf32>
    %27 = vector.broadcast %25 : vector<8x1xf32> to vector<8x32xf32>
    %28 = vector.broadcast %26 : vector<1x32xf32> to vector<8x32xf32>
    %29 = arith.subf %27, %28 : vector<8x32xf32>
    %30 = math.absf %29 : vector<8x32xf32>
    %cst_10 = arith.constant 9.99999974E-6 : f32
    %31 = vector.broadcast %cst_10 : f32 to vector<8x32xf32>
    %32 = arith.addf %30, %31 : vector<8x32xf32>
    %cst_11 = arith.constant 1.000000e+00 : f32
    %33 = vector.broadcast %cst_11 : f32 to vector<8x32xf32>
    %34 = arith.divf %33, %32 : vector<8x32xf32>
    %cst_12 = arith.constant dense<0xFF800000> : vector<8xf32>
    %35 = vector.multi_reduction <maximumf>, %34, %cst_12 [1] : vector<8x32xf32> to vector<8xf32>
    %36 = vector.shape_cast %35 : vector<8xf32> to vector<8x1xf32>
    %37 = vector.broadcast %36 : vector<8x1xf32> to vector<8x32xf32>
    %38 = arith.subf %34, %37 : vector<8x32xf32>
    %39 = math.exp %38 : vector<8x32xf32>
    %cst_13 = arith.constant dense<0.000000e+00> : vector<8xf32>
    %40 = vector.multi_reduction <add>, %39, %cst_13 [1] : vector<8x32xf32> to vector<8xf32>
    %41 = vector.shape_cast %40 : vector<8xf32> to vector<8x1xf32>
    %42 = tpu.reciprocal %41 {approx = true} : vector<8x1xf32> -> vector<8x1xf32>
    %43 = vector.broadcast %42 : vector<8x1xf32> to vector<8x32xf32>
    %44 = arith.mulf %39, %43 : vector<8x32xf32>
    %c1 = arith.constant 1 : index
    %c0_14 = arith.constant 0 : index
    %c0_15 = arith.constant 0 : index
    %45 = vector.load %arg3[%c1, %c0_14, %c0_15] : memref<2x32x32xf32, #tpu.memory_space<vmem>>, vector<1x32x32xf32>
    %46 = vector.shape_cast %45 : vector<1x32x32xf32> to vector<32x32xf32>
    %cst_16 = arith.constant dense<0.000000e+00> : vector<8x32xf32>
    %47 = tpu.matmul %44, %46, %cst_16 {dimension_numbers = #tpu.dot_dimension_numbers<[1], [0], [0], [1], [0, 0, 1, 1], [], []>} : vector<8x32xf32>, vector<32x32xf32>, vector<8x32xf32> -> vector<8x32xf32>
    %c0_17 = arith.constant 0 : index
    %c0_18 = arith.constant 0 : index
    %48 = vector.load %arg4[%c0_17, %c0_18] : memref<8x2xi32, #tpu.memory_space<vmem>>, vector<8x2xi32>
    %49 = tpu.iota {dimensions = array<i32: 1>} : vector<8x16xi32>
    %50 = vector.extract_strided_slice %48 {offsets = [0, 0], sizes = [8, 1], strides = [1, 1]} : vector<8x2xi32> to vector<8x1xi32>
    %51 = vector.broadcast %50 : vector<8x1xi32> to vector<8x16xi32>
    %52 = arith.cmpi eq, %49, %51 : vector<8x16xi32>
    %53 = arith.extui %52 : vector<8x16xi1> to vector<8x16xi32>
    %54 = arith.sitofp %53 : vector<8x16xi32> to vector<8x16xf32>
    %c0_19 = arith.constant 0 : index
    %c0_20 = arith.constant 0 : index
    %c0_21 = arith.constant 0 : index
    %55 = vector.load %arg5[%c0_19, %c0_20, %c0_21] : memref<2x16x32xf32, #tpu.memory_space<vmem>>, vector<1x16x32xf32>
    %56 = vector.shape_cast %55 : vector<1x16x32xf32> to vector<16x32xf32>
    %cst_22 = arith.constant dense<0.000000e+00> : vector<8x32xf32>
    %57 = tpu.matmul %54, %56, %cst_22 {dimension_numbers = #tpu.dot_dimension_numbers<[1], [0], [0], [1], [0, 0, 1, 1], [], []>} : vector<8x16xf32>, vector<16x32xf32>, vector<8x32xf32> -> vector<8x32xf32>
    %58 = vector.extract_strided_slice %48 {offsets = [0, 1], sizes = [8, 1], strides = [1, 1]} : vector<8x2xi32> to vector<8x1xi32>
    %59 = vector.broadcast %58 : vector<8x1xi32> to vector<8x16xi32>
    %60 = arith.cmpi eq, %49, %59 : vector<8x16xi32>
    %61 = arith.extui %60 : vector<8x16xi1> to vector<8x16xi32>
    %62 = arith.sitofp %61 : vector<8x16xi32> to vector<8x16xf32>
    %c1_23 = arith.constant 1 : index
    %c0_24 = arith.constant 0 : index
    %c0_25 = arith.constant 0 : index
    %63 = vector.load %arg5[%c1_23, %c0_24, %c0_25] : memref<2x16x32xf32, #tpu.memory_space<vmem>>, vector<1x16x32xf32>
    %64 = vector.shape_cast %63 : vector<1x16x32xf32> to vector<16x32xf32>
    %cst_26 = arith.constant dense<0.000000e+00> : vector<8x32xf32>
    %65 = tpu.matmul %62, %64, %cst_26 {dimension_numbers = #tpu.dot_dimension_numbers<[1], [0], [0], [1], [0, 0, 1, 1], [], []>} : vector<8x16xf32>, vector<16x32xf32>, vector<8x32xf32> -> vector<8x32xf32>
    %66 = tpu.concatenate %24, %47, %57, %65 in 1 : vector<8x32xf32>, vector<8x32xf32>, vector<8x32xf32>, vector<8x32xf32> -> vector<8x128xf32>
    %c0_27 = arith.constant 0 : index
    %c0_28 = arith.constant 0 : index
    %67 = vector.load %arg6[%c0_27, %c0_28] : memref<8x128xf32, #tpu.memory_space<vmem>>, vector<8x128xf32>
    tpu.vector_store %arg6[%c0_27, %c0_28], %66 {strides = array<i32>} : memref<8x128xf32, #tpu.memory_space<vmem>>, vector<8x128xf32>,
    return
  }
  func.func @transform_0(%arg0: i32) -> (i32, i32) {
    %c0_i32 = arith.constant 0 : i32
    %c0_i32_0 = arith.constant 0 : i32
    return %arg0, %c0_i32 : i32, i32
  }
  func.func @transform_1(%arg0: i32) -> (i32, i32) {
    %c0_i32 = arith.constant 0 : i32
    %c0_i32_0 = arith.constant 0 : i32
    %c0_i32_1 = arith.constant 0 : i32
    return %c0_i32, %c0_i32_0 : i32, i32
  }
  func.func @transform_2(%arg0: i32) -> (i32, i32, i32) {
    %c0_i32 = arith.constant 0 : i32
    %c0_i32_0 = arith.constant 0 : i32
    %c0_i32_1 = arith.constant 0 : i32
    %c0_i32_2 = arith.constant 0 : i32
    return %c0_i32, %c0_i32_0, %c0_i32_1 : i32, i32, i32
  }
  func.func @transform_3(%arg0: i32) -> (i32, i32) {
    %c0_i32 = arith.constant 0 : i32
    %c0_i32_0 = arith.constant 0 : i32
    return %arg0, %c0_i32 : i32, i32
  }
  func.func @transform_4(%arg0: i32) -> (i32, i32, i32) {
    %c0_i32 = arith.constant 0 : i32
    %c0_i32_0 = arith.constant 0 : i32
    %c0_i32_1 = arith.constant 0 : i32
    %c0_i32_2 = arith.constant 0 : i32
    return %c0_i32, %c0_i32_0, %c0_i32_1 : i32, i32, i32
  }
  func.func @transform_5(%arg0: i32) -> (i32, i32) {
    %c0_i32 = arith.constant 0 : i32
    %c0_i32_0 = arith.constant 0 : i32
    return %arg0, %c0_i32 : i32, i32
  }
}

</mosaic_0001>

<llo_original>
// kernel: tpu_custom_call.1
$region0: #{tpu_custom_call.1}
  #allocation0 [shape = 'u32[]', space=smem, size = 0x4, offset = 0x4, fixed_abs, tag = 'smem constant byte address 0x4 - core index']
  #allocation1 [shape = 'u32[144,128]{1,0:T(1,128)}', space=vmem, size = 0x12000, scoped, tag = 'internal scratch']
  %s0 = inlined_call_operand.vmem [shape: f32[8,2], index: 0, kind: input, shape index: {}]
  %s1 = inlined_call_operand.vmem [shape: f32[2,32], index: 1, kind: input, shape index: {}]
  %s2 = inlined_call_operand.hbm [shape: f32[2,32,32], index: 2, kind: input, shape index: {}]
  %s3 = inlined_call_operand.vmem [shape: s32[8,2], index: 3, kind: input, shape index: {}]
  %s4 = inlined_call_operand.hbm [shape: f32[2,16,32], index: 4, kind: input, shape index: {}]
  %s5 = inlined_call_operand.hbm [shape: f32[8,128], index: 5, kind: output, shape index: {}]
  %s6 = sld [smem:[#allocation0]]
  $region38: #{tpu_custom_call.1} parent=0
    _
  %s8 = ssub.s32 1, %s6
  %s9 = scalar_select 0, %s8, %s6
  $region1: #{tpu_custom_call.1} parent=0
    #allocation2 [shape = 'u8[32768]{0}', space=vmem, size = 0x8000, scoped, tag = 'input window, operand 2, single buffered']
    #allocation3 [shape = 's32[1]{0}', space=sflag, size = 0x4, scoped, tag = 'scoped memory for tpu_custom_call.1']
    #allocation4 [shape = 's32[1]{0}', space=sflag, size = 0x4, scoped, tag = 'scoped memory for tpu_custom_call.1']
    #allocation5 [shape = 'u8[16384]{0}', space=vmem, size = 0x4000, scoped, tag = 'input window, operand 4, single buffered']
    #allocation6 [shape = 's32[1]{0}', space=sflag, size = 0x4, scoped, tag = 'scoped memory for tpu_custom_call.1']
    #allocation7 [shape = 'u8[4096]{0}', space=vmem, size = 0x1000, scoped, tag = 'output window, operand 0, single buffered']
    %10 = vsyncpa [#allocation3], 0
    %11 = vsyncpa [#allocation6], 0
    %12 = vsyncpa [#allocation4], 0
    // Predicated region
    $region2: #{tpu_custom_call.1} parent=1 // pred_check
      _
    $region3: #{tpu_custom_call.1} parent=1 // pred_check_branch
      %14 = sbr.rel (0) target = $region5
    $region4: #{tpu_custom_call.1} parent=1 // pred_region
      _
    $region5: #{tpu_custom_call.1} parent=1 // pred_fallthru
      _
    // Predicated region
    $region6: #{tpu_custom_call.1} parent=1 // pred_check
      _
    $region7: #{tpu_custom_call.1} parent=1 // pred_check_branch
      %16 = sbr.rel (0) target = $region9
    $region8: #{tpu_custom_call.1} parent=1 // pred_region
      _
    $region9: #{tpu_custom_call.1} parent=1 // pred_fallthru
      _
    // Predicated region
    $region10: #{tpu_custom_call.1} parent=1 // pred_check
      _
    $region11: #{tpu_custom_call.1} parent=1 // pred_check_branch
      %18 = sbr.rel (0) target = $region13
    $region12: #{tpu_custom_call.1} parent=1 // pred_region
      %s20 = ssub.s32 1024, 1024
      %21 = vsyncadd [#allocation3], %s20
      %s22 = sshll.u32 [#allocation2], 4
      %s23 = int_to_ptr.vmem [resolvable:$true] %s22
      %28 = dma.hbm_to_vmem [thread:$0]  %s2, 1024, %s23, [#allocation3], 128, 128, 8
    $region13: #{tpu_custom_call.1} parent=1 // pred_fallthru
      _
    // Predicated region
    $region14: #{tpu_custom_call.1} parent=1 // pred_check
      _
    $region15: #{tpu_custom_call.1} parent=1 // pred_check_branch
      %30 = sbr.rel (0) target = $region17
    $region16: #{tpu_custom_call.1} parent=1 // pred_region
      _
    $region17: #{tpu_custom_call.1} parent=1 // pred_fallthru
      _
    // Predicated region
    $region18: #{tpu_custom_call.1} parent=1 // pred_check
      _
    $region19: #{tpu_custom_call.1} parent=1 // pred_check_branch
      %32 = sbr.rel (0) target = $region21
    $region20: #{tpu_custom_call.1} parent=1 // pred_region
      %s34 = ssub.s32 512, 512
      %35 = vsyncadd [#allocation6], %s34
      %s36 = sshll.u32 [#allocation5], 4
      %s37 = int_to_ptr.vmem [resolvable:$true] %s36
      %42 = dma.hbm_to_vmem [thread:$0]  %s4, 512, %s37, [#allocation6], 128, 128, 8
    $region21: #{tpu_custom_call.1} parent=1 // pred_fallthru
      _
    // Predicated region
    $region22: #{tpu_custom_call.1} parent=1 // pred_check
      _
    $region23: #{tpu_custom_call.1} parent=1 // pred_check_branch
      %44 = sbr.rel (0) target = $region25
    $region24: #{tpu_custom_call.1} parent=1 // pred_region
      %45 = dma.done [#allocation3], 1024
    $region25: #{tpu_custom_call.1} parent=1 // pred_fallthru
      _
    // Predicated region
    $region26: #{tpu_custom_call.1} parent=1 // pred_check
      _
    $region27: #{tpu_custom_call.1} parent=1 // pred_check_branch
      %47 = sbr.rel (0) target = $region29
    $region28: #{tpu_custom_call.1} parent=1 // pred_region
      %48 = dma.done [#allocation6], 512
    $region29: #{tpu_custom_call.1} parent=1 // pred_fallthru
      _
    %v49 = vld [vmem:[%s0] sm:$0xff]
    %v50 = vld [vmem:[%s1] sm:$0x3]
    %52 = vset.pattern.permute.xlu0 0
    %53 = vperm.xlu0 %52, %v49
    %v54 = vpop.permute.xlu0 %53
    %v56 = vlaneseq
    %v57 = vshrl.u32 %v56, 7
    %v58 = vsub.s32 0, %v57
    %v59 = vrot.slane %v50, %v58
    %v60 = vsub.f32 %v54, %v59
    %v61 = vand.u32 2147483647, %v60
    %v62 = vadd.f32 %v61, 1e-05
    %v63 = vrcp.pop %v62
    %v64 = vmul.f32 1.0, %v63
    %vm65 = vcmask 261120
    %v66 = vsel %vm65, %v64, -inf
    %67 = vmax.xlane.f32.xlu0 %v66
    %v68 = vpop.xlane.xlu0 %67
    %v69 = vsub.f32 %v64, %v68
    %v70 = vmul.f32 %v69, 1.442695
    %v71 = vpow.pop %v70
    %v72 = vsel %vm65, %v71, 0.0
    %73 = vadd.xlane.f32.xlu0 %v72
    %v74 = vpop.xlane.xlu0 %73
    %v75 = vrcp.pop %v74
    %v76 = vmul.f32 %v71, %v75
    %v77 = vld [vmem:[#allocation2] sm:$0xff]
    %v78 = vld [vmem:[#allocation2 + $0x8] sm:$0xff]
    %v79 = vld [vmem:[#allocation2 + $0x10] sm:$0xff]
    %v80 = vld [vmem:[#allocation2 + $0x18] sm:$0xff]
    %v82 = vsel %vm65, %v76, 0
    %84 = vmatprep.subr.mxu0 0.0
    %85 = vmatpush1.msra.mxu0 0.0
    %86 = vmatprep.subr.mxu0 0.0
    %87 = vmatpush1.msra.mxu0 0.0
    %88 = vmatprep.subr.mxu0 0.0
    %89 = vmatpush1.msra.mxu0 0.0
    %90 = vmatprep.subr.mxu0 0.0
    %91 = vmatpush1.msra.mxu0 0.0
    %92 = vmatprep.subr.mxu0 0.0
    %93 = vmatpush1.msra.mxu0 0.0
    %94 = vmatprep.subr.mxu0 0.0
    %95 = vmatpush1.msra.mxu0 0.0
    %96 = vmatprep.subr.mxu0 0.0
    %97 = vmatpush1.msra.mxu0 0.0
    %98 = vmatprep.subr.mxu0 0.0
    %99 = vmatpush1.msra.mxu0 0.0
    %100 = vmatprep.subr.mxu0 0.0
    %101 = vmatpush1.msra.mxu0 0.0
    %102 = vmatprep.subr.mxu0 0.0
    %103 = vmatpush1.msra.mxu0 0.0
    %104 = vmatprep.subr.mxu0 0.0
    %105 = vmatpush1.msra.mxu0 0.0
    %106 = vmatprep.subr.mxu0 0.0
    %107 = vmatpush1.msra.mxu0 0.0
    %108 = vmatprep.subr.mxu0 0.0
    %109 = vmatpush1.msra.mxu0 %v80
    %110 = vmatprep.subr.mxu0 0.0
    %111 = vmatpush1.msra.mxu0 %v79
    %112 = vmatprep.subr.mxu0 0.0
    %113 = vmatpush1.msra.mxu0 %v78
    %114 = vmatprep.subr.mxu0 0.0
    %115 = vmatpush1.msra.mxu0 %v77
    %116 = vmatprep.subr.mxu0 0.0
    %117 = vmatpush2.msra.mxu0 0.0
    %118 = vmatprep.subr.mxu0 0.0
    %119 = vmatpush2.msra.mxu0 0.0
    %120 = vmatprep.subr.mxu0 0.0
    %121 = vmatpush2.msra.mxu0 0.0
    %122 = vmatprep.subr.mxu0 0.0
    %123 = vmatpush2.msra.mxu0 0.0
    %124 = vmatprep.subr.mxu0 0.0
    %125 = vmatpush2.msra.mxu0 0.0
    %126 = vmatprep.subr.mxu0 0.0
    %127 = vmatpush2.msra.mxu0 0.0
    %128 = vmatprep.subr.mxu0 0.0
    %129 = vmatpush2.msra.mxu0 0.0
    %130 = vmatprep.subr.mxu0 0.0
    %131 = vmatpush2.msra.mxu0 0.0
    %132 = vmatprep.subr.mxu0 0.0
    %133 = vmatpush2.msra.mxu0 0.0
    %134 = vmatprep.subr.mxu0 0.0
    %135 = vmatpush2.msra.mxu0 0.0
    %136 = vmatprep.subr.mxu0 0.0
    %137 = vmatpush2.msra.mxu0 0.0
    %138 = vmatprep.subr.mxu0 0.0
    %139 = vmatpush2.msra.mxu0 0.0
    %140 = vmatprep.subr.mxu0 0.0
    %141 = vmatpush2.msra.mxu0 0.0
    %142 = vmatprep.subr.mxu0 0.0
    %143 = vmatpush2.msra.mxu0 0.0
    %144 = vmatprep.subr.mxu0 0.0
    %145 = vmatpush2.msra.mxu0 0.0
    %146 = vmatprep.subr.mxu0 0.0
    %147 = vmatpush2.msra.mxu0 0.0
    %148 = vmatprep.mubr.f32.mxu0 0.0
    %149 = vmatmul.mubr.f32.gmra.mxu0 %v82
    %v150 = vpop.f32.mrf.mxu0
    %v151 = vadd.f32 0.0, %v150
    %v152 = vpop.f32.mrf.mxu0
    %153 = vdwg.mxu0
    %154 = vset.pattern.permute.xlu0 1
    %155 = vperm.xlu0 %154, %v49
    %v156 = vpop.permute.xlu0 %155
    %v158 = vlaneseq
    %v159 = vshrl.u32 %v158, 7
    %v160 = vsub.s32 1, %v159
    %v161 = vrot.slane %v50, %v160
    %v162 = vsub.f32 %v156, %v161
    %v163 = vand.u32 2147483647, %v162
    %v164 = vadd.f32 %v163, 1e-05
    %v165 = vrcp.pop %v164
    %v166 = vmul.f32 1.0, %v165
    %v167 = vsel %vm65, %v166, -inf
    %168 = vmax.xlane.f32.xlu0 %v167
    %v169 = vpop.xlane.xlu0 %168
    %v170 = vsub.f32 %v166, %v169
    %v171 = vmul.f32 %v170, 1.442695
    %v172 = vpow.pop %v171
    %v173 = vsel %vm65, %v172, 0.0
    %174 = vadd.xlane.f32.xlu0 %v173
    %v175 = vpop.xlane.xlu0 %174
    %v176 = vrcp.pop %v175
    %v177 = vmul.f32 %v172, %v176
    %s178 = scalar_lea.vmem [#allocation2], 32
    %v179 = vld [vmem:[%s178] sm:$0xff]
    %v180 = vld [vmem:[%s178 + $0x8] sm:$0xff]
    %v181 = vld [vmem:[%s178 + $0x10] sm:$0xff]
    %v182 = vld [vmem:[%s178 + $0x18] sm:$0xff]
    %v184 = vsel %vm65, %v177, 0
    %186 = vmatprep.subr.mxu0 0.0
    %187 = vmatpush1.msra.mxu0 0.0
    %188 = vmatprep.subr.mxu0 0.0
    %189 = vmatpush1.msra.mxu0 0.0
    %190 = vmatprep.subr.mxu0 0.0
    %191 = vmatpush1.msra.mxu0 0.0
    %192 = vmatprep.subr.mxu0 0.0
    %193 = vmatpush1.msra.mxu0 0.0
    %194 = vmatprep.subr.mxu0 0.0
    %195 = vmatpush1.msra.mxu0 0.0
    %196 = vmatprep.subr.mxu0 0.0
    %197 = vmatpush1.msra.mxu0 0.0
    %198 = vmatprep.subr.mxu0 0.0
    %199 = vmatpush1.msra.mxu0 0.0
    %200 = vmatprep.subr.mxu0 0.0
    %201 = vmatpush1.msra.mxu0 0.0
    %202 = vmatprep.subr.mxu0 0.0
    %203 = vmatpush1.msra.mxu0 0.0
    %204 = vmatprep.subr.mxu0 0.0
    %205 = vmatpush1.msra.mxu0 0.0
    %206 = vmatprep.subr.mxu0 0.0
    %207 = vmatpush1.msra.mxu0 0.0
    %208 = vmatprep.subr.mxu0 0.0
    %209 = vmatpush1.msra.mxu0 0.0
    %210 = vmatprep.subr.mxu0 0.0
    %211 = vmatpush1.msra.mxu0 %v182
    %212 = vmatprep.subr.mxu0 0.0
    %213 = vmatpush1.msra.mxu0 %v181
    %214 = vmatprep.subr.mxu0 0.0
    %215 = vmatpush1.msra.mxu0 %v180
    %216 = vmatprep.subr.mxu0 0.0
    %217 = vmatpush1.msra.mxu0 %v179
    %218 = vmatprep.subr.mxu0 0.0
    %219 = vmatpush2.msra.mxu0 0.0
    %220 = vmatprep.subr.mxu0 0.0
    %221 = vmatpush2.msra.mxu0 0.0
    %222 = vmatprep.subr.mxu0 0.0
    %223 = vmatpush2.msra.mxu0 0.0
    %224 = vmatprep.subr.mxu0 0.0
    %225 = vmatpush2.msra.mxu0 0.0
    %226 = vmatprep.subr.mxu0 0.0
    %227 = vmatpush2.msra.mxu0 0.0
    %228 = vmatprep.subr.mxu0 0.0
    %229 = vmatpush2.msra.mxu0 0.0
    %230 = vmatprep.subr.mxu0 0.0
    %231 = vmatpush2.msra.mxu0 0.0
    %232 = vmatprep.subr.mxu0 0.0
    %233 = vmatpush2.msra.mxu0 0.0
    %234 = vmatprep.subr.mxu0 0.0
    %235 = vmatpush2.msra.mxu0 0.0
    %236 = vmatprep.subr.mxu0 0.0
    %237 = vmatpush2.msra.mxu0 0.0
    %238 = vmatprep.subr.mxu0 0.0
    %239 = vmatpush2.msra.mxu0 0.0
    %240 = vmatprep.subr.mxu0 0.0
    %241 = vmatpush2.msra.mxu0 0.0
    %242 = vmatprep.subr.mxu0 0.0
    %243 = vmatpush2.msra.mxu0 0.0
    %244 = vmatprep.subr.mxu0 0.0
    %245 = vmatpush2.msra.mxu0 0.0
    %246 = vmatprep.subr.mxu0 0.0
    %247 = vmatpush2.msra.mxu0 0.0
    %248 = vmatprep.subr.mxu0 0.0
    %249 = vmatpush2.msra.mxu0 0.0
    %250 = vmatprep.mubr.f32.mxu0 0.0
    %251 = vmatmul.mubr.f32.gmra.mxu0 %v184
    %v252 = vpop.f32.mrf.mxu0
    %v253 = vadd.f32 0.0, %v252
    %v254 = vpop.f32.mrf.mxu0
    %255 = vdwg.mxu0
    %v256 = vld [vmem:[%s3] sm:$0xff]
    %v257 = vlaneseq
    %v258 = vand.u32 %v257, 127
    %259 = vset.pattern.permute.xlu0 0
    %260 = vperm.xlu0 %259, %v256
    %v261 = vpop.permute.xlu0 %260
    %vm262 = vcmp.eq.s32.totalorder %v258, %v261
    %v263 = vsel %vm262, 1, 0
    %v264 = vcvt.s32.f32 %v263
    %v265 = vld [vmem:[#allocation5] sm:$0xff]
    %v266 = vld [vmem:[#allocation5 + $0x8] sm:$0xff]
    %vm267 = vcmask 130048
    %v269 = vsel %vm267, %v264, 0
    %271 = vmatprep.subr.mxu0 0.0
    %272 = vmatpush1.msra.mxu0 0.0
    %273 = vmatprep.subr.mxu0 0.0
    %274 = vmatpush1.msra.mxu0 0.0
    %275 = vmatprep.subr.mxu0 0.0
    %276 = vmatpush1.msra.mxu0 0.0
    %277 = vmatprep.subr.mxu0 0.0
    %278 = vmatpush1.msra.mxu0 0.0
    %279 = vmatprep.subr.mxu0 0.0
    %280 = vmatpush1.msra.mxu0 0.0
    %281 = vmatprep.subr.mxu0 0.0
    %282 = vmatpush1.msra.mxu0 0.0
    %283 = vmatprep.subr.mxu0 0.0
    %284 = vmatpush1.msra.mxu0 0.0
    %285 = vmatprep.subr.mxu0 0.0
    %286 = vmatpush1.msra.mxu0 0.0
    %287 = vmatprep.subr.mxu0 0.0
    %288 = vmatpush1.msra.mxu0 0.0
    %289 = vmatprep.subr.mxu0 0.0
    %290 = vmatpush1.msra.mxu0 0.0
    %291 = vmatprep.subr.mxu0 0.0
    %292 = vmatpush1.msra.mxu0 0.0
    %293 = vmatprep.subr.mxu0 0.0
    %294 = vmatpush1.msra.mxu0 0.0
    %295 = vmatprep.subr.mxu0 0.0
    %296 = vmatpush1.msra.mxu0 0.0
    %297 = vmatprep.subr.mxu0 0.0
    %298 = vmatpush1.msra.mxu0 0.0
    %299 = vmatprep.subr.mxu0 0.0
    %300 = vmatpush1.msra.mxu0 %v266
    %301 = vmatprep.subr.mxu0 0.0
    %302 = vmatpush1.msra.mxu0 %v265
    %303 = vmatprep.subr.mxu0 0.0
    %304 = vmatpush2.msra.mxu0 0.0
    %305 = vmatprep.subr.mxu0 0.0
    %306 = vmatpush2.msra.mxu0 0.0
    %307 = vmatprep.subr.mxu0 0.0
    %308 = vmatpush2.msra.mxu0 0.0
    %309 = vmatprep.subr.mxu0 0.0
    %310 = vmatpush2.msra.mxu0 0.0
    %311 = vmatprep.subr.mxu0 0.0
    %312 = vmatpush2.msra.mxu0 0.0
    %313 = vmatprep.subr.mxu0 0.0
    %314 = vmatpush2.msra.mxu0 0.0
    %315 = vmatprep.subr.mxu0 0.0
    %316 = vmatpush2.msra.mxu0 0.0
    %317 = vmatprep.subr.mxu0 0.0
    %318 = vmatpush2.msra.mxu0 0.0
    %319 = vmatprep.subr.mxu0 0.0
    %320 = vmatpush2.msra.mxu0 0.0
    %321 = vmatprep.subr.mxu0 0.0
    %322 = vmatpush2.msra.mxu0 0.0
    %323 = vmatprep.subr.mxu0 0.0
    %324 = vmatpush2.msra.mxu0 0.0
    %325 = vmatprep.subr.mxu0 0.0
    %326 = vmatpush2.msra.mxu0 0.0
    %327 = vmatprep.subr.mxu0 0.0
    %328 = vmatpush2.msra.mxu0 0.0
    %329 = vmatprep.subr.mxu0 0.0
    %330 = vmatpush2.msra.mxu0 0.0
    %331 = vmatprep.subr.mxu0 0.0
    %332 = vmatpush2.msra.mxu0 0.0
    %333 = vmatprep.subr.mxu0 0.0
    %334 = vmatpush2.msra.mxu0 0.0
    %335 = vmatprep.mubr.f32.mxu0 0.0
    %336 = vmatmul.mubr.f32.gmra.mxu0 %v269
    %v337 = vpop.f32.mrf.mxu0
    %v338 = vadd.f32 0.0, %v337
    %v339 = vpop.f32.mrf.mxu0
    %340 = vdwg.mxu0
    %341 = vset.pattern.permute.xlu0 1
    %342 = vperm.xlu0 %341, %v256
    %v343 = vpop.permute.xlu0 %342
    %vm344 = vcmp.eq.s32.totalorder %v258, %v343
    %v345 = vsel %vm344, 1, 0
    %v346 = vcvt.s32.f32 %v345
    %s347 = scalar_lea.vmem [#allocation5], 16
    %v348 = vld [vmem:[%s347] sm:$0xff]
    %v349 = vld [vmem:[%s347 + $0x8] sm:$0xff]
    %v351 = vsel %vm267, %v346, 0
    %353 = vmatprep.subr.mxu0 0.0
    %354 = vmatpush1.msra.mxu0 0.0
    %355 = vmatprep.subr.mxu0 0.0
    %356 = vmatpush1.msra.mxu0 0.0
    %357 = vmatprep.subr.mxu0 0.0
    %358 = vmatpush1.msra.mxu0 0.0
    %359 = vmatprep.subr.mxu0 0.0
    %360 = vmatpush1.msra.mxu0 0.0
    %361 = vmatprep.subr.mxu0 0.0
    %362 = vmatpush1.msra.mxu0 0.0
    %363 = vmatprep.subr.mxu0 0.0
    %364 = vmatpush1.msra.mxu0 0.0
    %365 = vmatprep.subr.mxu0 0.0
    %366 = vmatpush1.msra.mxu0 0.0
    %367 = vmatprep.subr.mxu0 0.0
    %368 = vmatpush1.msra.mxu0 0.0
    %369 = vmatprep.subr.mxu0 0.0
    %370 = vmatpush1.msra.mxu0 0.0
    %371 = vmatprep.subr.mxu0 0.0
    %372 = vmatpush1.msra.mxu0 0.0
    %373 = vmatprep.subr.mxu0 0.0
    %374 = vmatpush1.msra.mxu0 0.0
    %375 = vmatprep.subr.mxu0 0.0
    %376 = vmatpush1.msra.mxu0 0.0
    %377 = vmatprep.subr.mxu0 0.0
    %378 = vmatpush1.msra.mxu0 0.0
    %379 = vmatprep.subr.mxu0 0.0
    %380 = vmatpush1.msra.mxu0 0.0
    %381 = vmatprep.subr.mxu0 0.0
    %382 = vmatpush1.msra.mxu0 %v349
    %383 = vmatprep.subr.mxu0 0.0
    %384 = vmatpush1.msra.mxu0 %v348
    %385 = vmatprep.subr.mxu0 0.0
    %386 = vmatpush2.msra.mxu0 0.0
    %387 = vmatprep.subr.mxu0 0.0
    %388 = vmatpush2.msra.mxu0 0.0
    %389 = vmatprep.subr.mxu0 0.0
    %390 = vmatpush2.msra.mxu0 0.0
    %391 = vmatprep.subr.mxu0 0.0
    %392 = vmatpush2.msra.mxu0 0.0
    %393 = vmatprep.subr.mxu0 0.0
    %394 = vmatpush2.msra.mxu0 0.0
    %395 = vmatprep.subr.mxu0 0.0
    %396 = vmatpush2.msra.mxu0 0.0
    %397 = vmatprep.subr.mxu0 0.0
    %398 = vmatpush2.msra.mxu0 0.0
    %399 = vmatprep.subr.mxu0 0.0
    %400 = vmatpush2.msra.mxu0 0.0
    %401 = vmatprep.subr.mxu0 0.0
    %402 = vmatpush2.msra.mxu0 0.0
    %403 = vmatprep.subr.mxu0 0.0
    %404 = vmatpush2.msra.mxu0 0.0
    %405 = vmatprep.subr.mxu0 0.0
    %406 = vmatpush2.msra.mxu0 0.0
    %407 = vmatprep.subr.mxu0 0.0
    %408 = vmatpush2.msra.mxu0 0.0
    %409 = vmatprep.subr.mxu0 0.0
    %410 = vmatpush2.msra.mxu0 0.0
    %411 = vmatprep.subr.mxu0 0.0
    %412 = vmatpush2.msra.mxu0 0.0
    %413 = vmatprep.subr.mxu0 0.0
    %414 = vmatpush2.msra.mxu0 0.0
    %415 = vmatprep.subr.mxu0 0.0
    %416 = vmatpush2.msra.mxu0 0.0
    %417 = vmatprep.mubr.f32.mxu0 0.0
    %418 = vmatmul.mubr.f32.gmra.mxu0 %v351
    %v419 = vpop.f32.mrf.mxu0
    %v420 = vadd.f32 0.0, %v419
    %v421 = vpop.f32.mrf.mxu0
    %422 = vdwg.mxu0
    %424 = vrot.lane.b32.xlu0 %v253, 32
    %v425 = vpop.permute.xlu0 %424
    %428 = vrot.lane.b32.xlu0 %v338, 64
    %v429 = vpop.permute.xlu0 %428
    %432 = vrot.lane.b32.xlu0 %v420, 96
    %v433 = vpop.permute.xlu0 %432
    %v435 = vsel %vm65, %v151, %v425
    %vm436 = vcmask 523264
    %v437 = vsel %vm436, %v435, %v429
    %vm438 = vcmask 785408
    %v439 = vsel %vm438, %v437, %v433
    %440 = vst [vmem:[#allocation7] sm:$0xff] %v439
    // Predicated region
    $region30: #{tpu_custom_call.1} parent=1 // pred_check
      _
    $region31: #{tpu_custom_call.1} parent=1 // pred_check_branch
      %442 = sbr.rel (0) target = $region33
    $region32: #{tpu_custom_call.1} parent=1 // pred_region
      %s444 = ssub.s32 128, 128
      %445 = vsyncadd [#allocation4], %s444
      %s447 = sshll.u32 [#allocation7], 4
      %s448 = int_to_ptr.vmem [resolvable:$true] %s447
      %450 = dma.vmem_to_hbm [thread:$0]  %s448, 128, %s5, [#allocation4]
    $region33: #{tpu_custom_call.1} parent=1 // pred_fallthru
      _
    // Predicated region
    $region34: #{tpu_custom_call.1} parent=1 // pred_check
      _
    $region35: #{tpu_custom_call.1} parent=1 // pred_check_branch
      %452 = sbr.rel (0) target = $region37
    $region36: #{tpu_custom_call.1} parent=1 // pred_region
      %453 = dma.done [#allocation4], 128
    $region37: #{tpu_custom_call.1} parent=1 // pred_fallthru
      _
    %454 = vsyncpa [#allocation3], 1
    %455 = vsyncpa [#allocation6], 1
    %456 = vsyncpa [#allocation4], 1

</llo_original>
